<compile_context>
chip_gen: v6e
topology: v6e:2x2x1
jax: 0.10.0
libtpu: 0.0.40
codegen_flags: <defaults>
</compile_context>

<pallas_src>
import math
import functools

import jax
import jax.numpy as jnp
from jax.experimental import pallas as pl
from jax.experimental.pallas import tpu as pltpu


def _equal_conv2d_kernel(x_ref, w_ref, b_ref, o_ref, p_ref, *, K, pad, H, W, Cp, scale):
    # x_ref : (Cp, H*W)        one batch element, channels sublane-padded to Cp, lane-dense spatial
    # w_ref : (Co, K*K*Cp)     weight, columns ordered (kh, kw, ci) with zero-padded ci tail
    # b_ref : (Co, 1)          bias column
    # o_ref : (Co, Ho*Wo)      lane-dense output block (Ho == H, Wo == W on this path)
    # p_ref : (K*K*Cp, Ho*Wo)  VMEM im2col matrix, 8-sublane-aligned rows per tap
    HW = H * W
    x = x_ref[...].astype(jnp.float32)                              # (Cp, HW)

    # Hoisted once (review: don't rebuild iota/broadcasts per tap).
    lane = jax.lax.broadcasted_iota(jnp.int32, (Cp, HW), 1)         # flat spatial index
    if (W & (W - 1)) == 0:
        wo = jnp.bitwise_and(lane, W - 1)                           # column index, no vector int-div
    else:
        wo = lane % W  # TODO(synk): strength-reduce for non-power-of-two widths

    for kh in range(K):
        dh = kh - pad
        for kw in range(K):
            dw = kw - pad
            d = dh * W + dw
            # rolled[f] = x[f + d]  (valid lanes only); XLU lane rotate, no relayout.
            rolled = x if d == 0 else pltpu.roll(x, shift=(-d) % HW, axis=1)

            # Mask only the statically non-trivial padding/edge conditions.
            conds = []
            if dh < 0:
                conds.append(lane >= (-dh) * W)        # source row >= 0
            elif dh > 0:
                conds.append(lane < (H - dh) * W)      # source row < H
            if dw < 0:
                conds.append(wo >= -dw)                # source col >= 0
            elif dw > 0:
                conds.append(wo < W - dw)              # source col < W
            tap = rolled
            if conds:
                valid = conds[0]
                for c in conds[1:]:
                    valid = valid & c
                tap = jnp.where(valid, rolled, 0.0)

            t = kh * K + kw
            p_ref[t * Cp:(t + 1) * Cp, :] = tap        # aligned 8-sublane, unmasked store

    # Single MXU matmul over the full contraction (Co, K*K*Cp) @ (K*K*Cp, Ho*Wo), f32 acc.
    w = w_ref[...].astype(jnp.float32) * scale                       # equalized-lr scale, tiny
    acc = jnp.dot(w, p_ref[...], preferred_element_type=jnp.float32)
    acc = acc + b_ref[...].astype(jnp.float32)                       # (Co, 1) broadcast over lanes
    o_ref[...] = acc.astype(o_ref.dtype)                             # lane-dense (Co, 256) store


def equal_conv2d(x_nchw, weight_oikk, bias=None, *, stride=1, padding=0):
    """EqualConv2d forward. x_nchw: (N, Cin, H, W), weight: (Cout, Cin, K, K)."""
    N, Ci, H, W = x_nchw.shape
    Co, Ci_w, K, K2 = weight_oikk.shape
    assert Ci == Ci_w and K == K2

    if stride != 1 or 2 * padding != K - 1:
        # TODO(synk): strided / 'valid'-padding path (StyleGAN2 downsample convs) not implemented.
        raise NotImplementedError(
            "This Pallas kernel implements the stride=1 'same' conv path (2*padding == K-1).")

    Ho, Wo = H, W
    HoWo = Ho * Wo
    scale = 1.0 / math.sqrt(Ci * K * K)
    Cp = ((Ci + 7) // 8) * 8          # sublane-pad channels -> 8-aligned tap blocks (no-op if Ci%8==0)

    # Lane-dense input (N, Cp, H*W): free row-major reshape + tiny zero channel pad.
    x_flat = x_nchw.reshape(N, Ci, H * W)
    if Cp != Ci:
        x_flat = jnp.pad(x_flat, ((0, 0), (0, Cp - Ci), (0, 0)))

    # Weight as (Co, K*K*Cp), columns ordered (kh, kw, ci) with a zero-padded ci tail,
    # matching the im2col row order built in the kernel.  Tiny (a few hundred elems).
    w_mat = jnp.transpose(weight_oikk, (0, 2, 3, 1))                 # (Co, K, K, Ci)
    if Cp != Ci:
        w_mat = jnp.pad(w_mat, ((0, 0), (0, 0), (0, 0), (0, Cp - Ci)))
    w_mat = w_mat.reshape(Co, K * K * Cp)

    b_col = (bias if bias is not None
             else jnp.zeros((Co,), x_nchw.dtype)).reshape(Co, 1)

    kernel = functools.partial(_equal_conv2d_kernel, K=K, pad=padding,
                               H=H, W=W, Cp=Cp, scale=scale)

    out = pl.pallas_call(
        kernel,
        out_shape=jax.ShapeDtypeStruct((N, Co, HoWo), x_nchw.dtype),
        grid=(N,),                                    # batch axis; "parallel" -> 2 TCs on v7x
        in_specs=[
            pl.BlockSpec((None, Cp, H * W), lambda n: (n, 0, 0)),    # lane-dense DMA
            pl.BlockSpec((Co, K * K * Cp), lambda n: (0, 0)),
            pl.BlockSpec((Co, 1), lambda n: (0, 0)),
        ],
        out_specs=pl.BlockSpec((None, Co, HoWo), lambda n: (n, 0, 0)),
        scratch_shapes=[
            pltpu.VMEM((K * K * Cp, HoWo), jnp.float32),             # im2col P (~73 KB here)
        ],
        compiler_params=pltpu.CompilerParams(
            dimension_semantics=("parallel",)),
    )(x_flat, w_mat, b_col)

    # Free row-major reshape back to NCHW (no transpose on input or output).
    return out.reshape(N, Co, Ho, Wo)


if __name__ == "__main__":
    # Module config: EqualConv2d(in_channel=4, out_channel=8, kernel_size=3,
    #                            stride=1, padding=1, bias=True)
    key = jax.random.PRNGKey(0)
    kx, kw, kb = jax.random.split(key, 3)

    N, Cin, H, W = 2, 4, 16, 16
    Cout, K = 8, 3
    stride, padding = 1, 1

    x = jax.random.normal(kx, (N, Cin, H, W), jnp.float32)
    weight = jax.random.normal(kw, (Cout, Cin, K, K), jnp.float32)   # torch.randn init
    bias = 0.1 * jax.random.normal(kb, (Cout,), jnp.float32)         # exercise the bias epilogue

    out = equal_conv2d(x, weight, bias, stride=stride, padding=padding)
    out = jax.block_until_ready(out)

    # Reference: same math as conv2d_gradfix forward.  HIGHEST precision so the reference
    # is ~exact; the tolerance below covers the TPU MXU's default bf16-pass f32 matmul in
    # the kernel (structural bugs would produce O(1) errors, far above this tolerance).
    scale = 1.0 / math.sqrt(Cin * K * K)
    ref = jax.lax.conv_general_dilated(
        x, weight * scale,
        window_strides=(stride, stride),
        padding=((padding, padding), (padding, padding)),
        dimension_numbers=("NCHW", "OIHW", "NCHW"),
        precision=jax.lax.Precision.HIGHEST,
    ) + bias.reshape(1, Cout, 1, 1)

    assert out.shape == (N, Cout, H, W)
    max_err = float(jnp.max(jnp.abs(out - ref)))
    assert jnp.allclose(out, ref, atol=5e-2, rtol=1e-2), f"max abs err = {max_err}"

    print("KERNEL_OK")
</pallas_src>

<mosaic_0001>
module attributes {stable_mosaic.version = 11 : i64} {
  func.func @_equal_conv2d_kernel(%arg0: i32, %arg1: memref<1x8x256xf32, #tpu.memory_space<vmem>>, %arg2: memref<8x72xf32, #tpu.memory_space<vmem>>, %arg3: memref<8x1xf32, #tpu.memory_space<vmem>>, %arg4: memref<1x8x256xf32, #tpu.memory_space<vmem>>, %arg5: memref<72x256xf32, #tpu.memory_space<vmem>>) attributes {dimension_semantics = [#tpu.dimension_semantics<parallel>], iteration_bounds = array<i64: 2>, scalar_prefetch = 0 : i64, scratch_operands = 1 : i64, tpu.core_type = #tpu.core_type<tc>, window_params = [{transform_indices = @transform_0, window_bounds = array<i64: 1, 8, 256>}, {pipeline_mode = #tpu.pipeline_mode<synchronous>, transform_indices = @transform_1, window_bounds = array<i64: 8, 72>}, {pipeline_mode = #tpu.pipeline_mode<synchronous>, transform_indices = @transform_2, window_bounds = array<i64: 8, 1>}, {transform_indices = @transform_3, window_bounds = array<i64: 1, 8, 256>}]} {
    %c0 = arith.constant 0 : index
    %c0_0 = arith.constant 0 : index
    %c0_1 = arith.constant 0 : index
    %0 = vector.load %arg1[%c0, %c0_0, %c0_1] : memref<1x8x256xf32, #tpu.memory_space<vmem>>, vector<1x8x256xf32>
    %1 = vector.shape_cast %0 : vector<1x8x256xf32> to vector<8x256xf32>
    %2 = tpu.iota {dimensions = array<i32: 1>} : vector<8x256xi32>
    %c15_i32 = arith.constant 15 : i32
    %3 = vector.broadcast %c15_i32 : i32 to vector<8x256xi32>
    %4 = arith.andi %2, %3 : vector<8x256xi32>
    %c17_i32 = arith.constant 17 : i32
    %5 = tpu.dynamic_rotate %1 by %c17_i32 dim 1 : vector<8x256xf32>, i32 -> vector<8x256xf32>
    %c16_i32 = arith.constant 16 : i32
    %6 = vector.broadcast %c16_i32 : i32 to vector<8x256xi32>
    %7 = arith.cmpi sge, %2, %6 : vector<8x256xi32>
    %c1_i32 = arith.constant 1 : i32
    %8 = vector.broadcast %c1_i32 : i32 to vector<8x256xi32>
    %9 = arith.cmpi sge, %4, %8 : vector<8x256xi32>
    %10 = arith.andi %7, %9 : vector<8x256xi1>
    %cst = arith.constant 0.000000e+00 : f32
    %11 = vector.broadcast %cst : f32 to vector<8x256xf32>
    %12 = arith.select %10, %5, %11 : vector<8x256xi1>, vector<8x256xf32>
    %c0_2 = arith.constant 0 : index
    %c0_3 = arith.constant 0 : index
    %13 = vector.load %arg5[%c0_2, %c0_3] : memref<72x256xf32, #tpu.memory_space<vmem>>, vector<8x256xf32>
    tpu.vector_store %arg5[%c0_2, %c0_3], %12 {strides = array<i32>} : memref<72x256xf32, #tpu.memory_space<vmem>>, vector<8x256xf32>,
    %c16_i32_4 = arith.constant 16 : i32
    %14 = tpu.dynamic_rotate %1 by %c16_i32_4 dim 1 : vector<8x256xf32>, i32 -> vector<8x256xf32>
    %c16_i32_5 = arith.constant 16 : i32
    %15 = vector.broadcast %c16_i32_5 : i32 to vector<8x256xi32>
    %16 = arith.cmpi sge, %2, %15 : vector<8x256xi32>
    %cst_6 = arith.constant 0.000000e+00 : f32
    %17 = vector.broadcast %cst_6 : f32 to vector<8x256xf32>
    %18 = arith.select %16, %14, %17 : vector<8x256xi1>, vector<8x256xf32>
    %c8 = arith.constant 8 : index
    %c0_7 = arith.constant 0 : index
    %19 = vector.load %arg5[%c8, %c0_7] : memref<72x256xf32, #tpu.memory_space<vmem>>, vector<8x256xf32>
    tpu.vector_store %arg5[%c8, %c0_7], %18 {strides = array<i32>} : memref<72x256xf32, #tpu.memory_space<vmem>>, vector<8x256xf32>,
    %c15_i32_8 = arith.constant 15 : i32
    %20 = tpu.dynamic_rotate %1 by %c15_i32_8 dim 1 : vector<8x256xf32>, i32 -> vector<8x256xf32>
    %c16_i32_9 = arith.constant 16 : i32
    %21 = vector.broadcast %c16_i32_9 : i32 to vector<8x256xi32>
    %22 = arith.cmpi sge, %2, %21 : vector<8x256xi32>
    %c15_i32_10 = arith.constant 15 : i32
    %23 = vector.broadcast %c15_i32_10 : i32 to vector<8x256xi32>
    %24 = arith.cmpi slt, %4, %23 : vector<8x256xi32>
    %25 = arith.andi %22, %24 : vector<8x256xi1>
    %cst_11 = arith.constant 0.000000e+00 : f32
    %26 = vector.broadcast %cst_11 : f32 to vector<8x256xf32>
    %27 = arith.select %25, %20, %26 : vector<8x256xi1>, vector<8x256xf32>
    %c16 = arith.constant 16 : index
    %c0_12 = arith.constant 0 : index
    %28 = vector.load %arg5[%c16, %c0_12] : memref<72x256xf32, #tpu.memory_space<vmem>>, vector<8x256xf32>
    tpu.vector_store %arg5[%c16, %c0_12], %27 {strides = array<i32>} : memref<72x256xf32, #tpu.memory_space<vmem>>, vector<8x256xf32>,
    %c1_i32_13 = arith.constant 1 : i32
    %29 = tpu.dynamic_rotate %1 by %c1_i32_13 dim 1 : vector<8x256xf32>, i32 -> vector<8x256xf32>
    %c1_i32_14 = arith.constant 1 : i32
    %30 = vector.broadcast %c1_i32_14 : i32 to vector<8x256xi32>
    %31 = arith.cmpi sge, %4, %30 : vector<8x256xi32>
    %cst_15 = arith.constant 0.000000e+00 : f32
    %32 = vector.broadcast %cst_15 : f32 to vector<8x256xf32>
    %33 = arith.select %31, %29, %32 : vector<8x256xi1>, vector<8x256xf32>
    %c24 = arith.constant 24 : index
    %c0_16 = arith.constant 0 : index
    %34 = vector.load %arg5[%c24, %c0_16] : memref<72x256xf32, #tpu.memory_space<vmem>>, vector<8x256xf32>
    tpu.vector_store %arg5[%c24, %c0_16], %33 {strides = array<i32>} : memref<72x256xf32, #tpu.memory_space<vmem>>, vector<8x256xf32>,
    %c32 = arith.constant 32 : index
    %c0_17 = arith.constant 0 : index
    %35 = vector.load %arg5[%c32, %c0_17] : memref<72x256xf32, #tpu.memory_space<vmem>>, vector<8x256xf32>
    tpu.vector_store %arg5[%c32, %c0_17], %1 {strides = array<i32>} : memref<72x256xf32, #tpu.memory_space<vmem>>, vector<8x256xf32>,
    %c255_i32 = arith.constant 255 : i32
    %36 = tpu.dynamic_rotate %1 by %c255_i32 dim 1 : vector<8x256xf32>, i32 -> vector<8x256xf32>
    %c15_i32_18 = arith.constant 15 : i32
    %37 = vector.broadcast %c15_i32_18 : i32 to vector<8x256xi32>
    %38 = arith.cmpi slt, %4, %37 : vector<8x256xi32>
    %cst_19 = arith.constant 0.000000e+00 : f32
    %39 = vector.broadcast %cst_19 : f32 to vector<8x256xf32>
    %40 = arith.select %38, %36, %39 : vector<8x256xi1>, vector<8x256xf32>
    %c40 = arith.constant 40 : index
    %c0_20 = arith.constant 0 : index
    %41 = vector.load %arg5[%c40, %c0_20] : memref<72x256xf32, #tpu.memory_space<vmem>>, vector<8x256xf32>
    tpu.vector_store %arg5[%c40, %c0_20], %40 {strides = array<i32>} : memref<72x256xf32, #tpu.memory_space<vmem>>, vector<8x256xf32>,
    %c241_i32 = arith.constant 241 : i32
    %42 = tpu.dynamic_rotate %1 by %c241_i32 dim 1 : vector<8x256xf32>, i32 -> vector<8x256xf32>
    %c240_i32 = arith.constant 240 : i32
    %43 = vector.broadcast %c240_i32 : i32 to vector<8x256xi32>
    %44 = arith.cmpi slt, %2, %43 : vector<8x256xi32>
    %c1_i32_21 = arith.constant 1 : i32
    %45 = vector.broadcast %c1_i32_21 : i32 to vector<8x256xi32>
    %46 = arith.cmpi sge, %4, %45 : vector<8x256xi32>
    %47 = arith.andi %44, %46 : vector<8x256xi1>
    %cst_22 = arith.constant 0.000000e+00 : f32
    %48 = vector.broadcast %cst_22 : f32 to vector<8x256xf32>
    %49 = arith.select %47, %42, %48 : vector<8x256xi1>, vector<8x256xf32>
    %c48 = arith.constant 48 : index
    %c0_23 = arith.constant 0 : index
    %50 = vector.load %arg5[%c48, %c0_23] : memref<72x256xf32, #tpu.memory_space<vmem>>, vector<8x256xf32>
    tpu.vector_store %arg5[%c48, %c0_23], %49 {strides = array<i32>} : memref<72x256xf32, #tpu.memory_space<vmem>>, vector<8x256xf32>,
    %c240_i32_24 = arith.constant 240 : i32
    %51 = tpu.dynamic_rotate %1 by %c240_i32_24 dim 1 : vector<8x256xf32>, i32 -> vector<8x256xf32>
    %c240_i32_25 = arith.constant 240 : i32
    %52 = vector.broadcast %c240_i32_25 : i32 to vector<8x256xi32>
    %53 = arith.cmpi slt, %2, %52 : vector<8x256xi32>
    %cst_26 = arith.constant 0.000000e+00 : f32
    %54 = vector.broadcast %cst_26 : f32 to vector<8x256xf32>
    %55 = arith.select %53, %51, %54 : vector<8x256xi1>, vector<8x256xf32>
    %c56 = arith.constant 56 : index
    %c0_27 = arith.constant 0 : index
    %56 = vector.load %arg5[%c56, %c0_27] : memref<72x256xf32, #tpu.memory_space<vmem>>, vector<8x256xf32>
    tpu.vector_store %arg5[%c56, %c0_27], %55 {strides = array<i32>} : memref<72x256xf32, #tpu.memory_space<vmem>>, vector<8x256xf32>,
    %c239_i32 = arith.constant 239 : i32
    %57 = tpu.dynamic_rotate %1 by %c239_i32 dim 1 : vector<8x256xf32>, i32 -> vector<8x256xf32>
    %c240_i32_28 = arith.constant 240 : i32
    %58 = vector.broadcast %c240_i32_28 : i32 to vector<8x256xi32>
    %59 = arith.cmpi slt, %2, %58 : vector<8x256xi32>
    %c15_i32_29 = arith.constant 15 : i32
    %60 = vector.broadcast %c15_i32_29 : i32 to vector<8x256xi32>
    %61 = arith.cmpi slt, %4, %60 : vector<8x256xi32>
    %62 = arith.andi %59, %61 : vector<8x256xi1>
    %cst_30 = arith.constant 0.000000e+00 : f32
    %63 = vector.broadcast %cst_30 : f32 to vector<8x256xf32>
    %64 = arith.select %62, %57, %63 : vector<8x256xi1>, vector<8x256xf32>
    %c64 = arith.constant 64 : index
    %c0_31 = arith.constant 0 : index
    %65 = vector.load %arg5[%c64, %c0_31] : memref<72x256xf32, #tpu.memory_space<vmem>>, vector<8x256xf32>
    tpu.vector_store %arg5[%c64, %c0_31], %64 {strides = array<i32>} : memref<72x256xf32, #tpu.memory_space<vmem>>, vector<8x256xf32>,
    %c0_32 = arith.constant 0 : index
    %c0_33 = arith.constant 0 : index
    %66 = vector.load %arg2[%c0_32, %c0_33] : memref<8x72xf32, #tpu.memory_space<vmem>>, vector<8x72xf32>
    %cst_34 = arith.constant 0.166666672 : f32
    %67 = vector.broadcast %cst_34 : f32 to vector<8x72xf32>
    %68 = arith.mulf %66, %67 : vector<8x72xf32>
    %c0_35 = arith.constant 0 : index
    %c0_36 = arith.constant 0 : index
    %69 = vector.load %arg5[%c0_35, %c0_36] : memref<72x256xf32, #tpu.memory_space<vmem>>, vector<72x256xf32>
    %cst_37 = arith.constant dense<0.000000e+00> : vector<8x256xf32>
    %70 = tpu.matmul %68, %69, %cst_37 {dimension_numbers = #tpu.dot_dimension_numbers<[1], [0], [0], [1], [0, 0, 1, 1], [], []>} : vector<8x72xf32>, vector<72x256xf32>, vector<8x256xf32> -> vector<8x256xf32>
    %c0_38 = arith.constant 0 : index
    %c0_39 = arith.constant 0 : index
    %71 = vector.load %arg3[%c0_38, %c0_39] : memref<8x1xf32, #tpu.memory_space<vmem>>, vector<8x1xf32>
    %72 = vector.broadcast %71 : vector<8x1xf32> to vector<8x256xf32>
    %73 = arith.addf %70, %72 : vector<8x256xf32>
    %c0_40 = arith.constant 0 : index
    %c0_41 = arith.constant 0 : index
    %c0_42 = arith.constant 0 : index
    %74 = vector.load %arg4[%c0_40, %c0_41, %c0_42] : memref<1x8x256xf32, #tpu.memory_space<vmem>>, vector<1x8x256xf32>
    %75 = vector.shape_cast %74 : vector<1x8x256xf32> to vector<8x256xf32>
    %76 = vector.shape_cast %73 : vector<8x256xf32> to vector<1x8x256xf32>
    tpu.vector_store %arg4[%c0_40, %c0_41, %c0_42], %76 {strides = array<i32>} : memref<1x8x256xf32, #tpu.memory_space<vmem>>, vector<1x8x256xf32>,
    return
  }
  func.func @transform_0(%arg0: i32) -> (i32, i32, i32) {
    %c0_i32 = arith.constant 0 : i32
    %c0_i32_0 = arith.constant 0 : i32
    %c0_i32_1 = arith.constant 0 : i32
    return %arg0, %c0_i32, %c0_i32_0 : i32, i32, i32
  }
  func.func @transform_1(%arg0: i32) -> (i32, i32) {
    %c0_i32 = arith.constant 0 : i32
    %c0_i32_0 = arith.constant 0 : i32
    %c0_i32_1 = arith.constant 0 : i32
    return %c0_i32, %c0_i32_0 : i32, i32
  }
  func.func @transform_2(%arg0: i32) -> (i32, i32) {
    %c0_i32 = arith.constant 0 : i32
    %c0_i32_0 = arith.constant 0 : i32
    %c0_i32_1 = arith.constant 0 : i32
    return %c0_i32, %c0_i32_0 : i32, i32
  }
  func.func @transform_3(%arg0: i32) -> (i32, i32, i32) {
    %c0_i32 = arith.constant 0 : i32
    %c0_i32_0 = arith.constant 0 : i32
    %c0_i32_1 = arith.constant 0 : i32
    return %arg0, %c0_i32, %c0_i32_0 : i32, i32, i32
  }
}

</mosaic_0001>

<llo_original>
// kernel: tpu_custom_call.1
$region0: #{tpu_custom_call.1}
  #allocation0 [shape = 'u32[]', space=smem, size = 0x4, offset = 0x4, fixed_abs, tag = 'smem constant byte address 0x4 - core index']
  #allocation1 [shape = 'u32[144,128]{1,0:T(1,128)}', space=vmem, size = 0x12000, scoped, tag = 'internal scratch']
  #allocation2 [shape = 'f32[72,256]{1,0:T(8,128)}', space=vmem, size = 0x12000, scoped, tag = 'scratch operand']
  %s0 = inlined_call_operand.hbm [shape: f32[2,8,256], index: 0, kind: input, shape index: {}]
  %s1 = inlined_call_operand.vmem [shape: f32[8,72], index: 1, kind: input, shape index: {}]
  %s2 = inlined_call_operand.vmem [shape: f32[8,1], index: 2, kind: input, shape index: {}]
  %s3 = inlined_call_operand.hbm [shape: f32[2,8,256], index: 3, kind: output, shape index: {}]
  %s4 = sld [smem:[#allocation0]]
  $region49: #{tpu_custom_call.1} parent=0
    _
  %s6 = ssub.s32 1, %s4
  %s7 = scalar_select 0, %s6, %s4
  $region1: #{tpu_custom_call.1} parent=0
    #allocation3 [shape = 'u8[16384]{0}', space=vmem, size = 0x4000, scoped, tag = 'input window, operand 0']
    #allocation4 [shape = 's32[2]{0}', space=sflag, size = 0x8, scoped, tag = 'scoped memory for tpu_custom_call.1']
    #allocation5 [shape = 's32[2]{0}', space=sflag, size = 0x8, scoped, tag = 'scoped memory for tpu_custom_call.1']
    #allocation6 [shape = 'u8[16384]{0}', space=vmem, size = 0x4000, scoped, tag = 'output window, operand 0']
    %8 = vsyncpa [#allocation4], 0
    %s9 = scalar_lea.sflag [#allocation4], 1
    %10 = vsyncpa %s9, 0
    %11 = vsyncpa [#allocation5], 0
    %s12 = scalar_lea.sflag [#allocation5], 1
    %13 = vsyncpa %s12, 0
    loop: start=0, step=1, limit=4
    $region2: #{tpu_custom_call.1} parent=1 // loop_pre_header
      _
    $region3: #{tpu_custom_call.1} parent=1 // loop_header
      %s15 = sphi 0, %s19
      %p16 = scmp.ge.s32.totalorder %s15, 4
      %s25 = sphi 0, %s27
      %s28 = sphi 0, %s25
      %s29 = sphi 0, %s28
      %s45 = sphi 0, %s29
      %s49 = sphi 0, %s49
      %s51 = sphi 0, %s49
      %s52 = sphi 0, %s51
      %s66 = sphi 0, %s52
      %s70 = sphi 0, %s70
      %s72 = sphi 0, %s70
      %s73 = sphi 0, %s72
      %s87 = sphi 0, %s73
      %s93 = sphi 0, %s95
      %s96 = sphi 0, %s93
      %s97 = sphi 0, %s96
      %s113 = sphi 0, %s97
    $region4: #{tpu_custom_call.1} parent=1 // loop_header_branch
      %18 = sbr.rel (%p16) target = $region8
    $region5: #{tpu_custom_call.1} parent=1 // loop_body
      %s20 = ssub.s32 %s15, 1
      %s21 = ssub.s32 %s15, 2
      %s22 = sadd.s32 %s15, 1
      %s23 = ssub.s32 %s15, %s22
      %p24 = scmp.eq.s32.totalorder %s23, 0
      %s26 = sadd.s32 %s25, 1
      %s27 = scalar_select %p24, %s25, %s26
      %p30 = pneg %p24
      %p31 = scmp.eq.s32.totalorder %s15, 1
      %p32 = por %p30, %p31
      %p33 = scmp.ne.s32.totalorder %s25, %s28
      %p34 = scmp.eq.s32.totalorder %s15, 0
      %p35 = por %p33, %p34
      %p36 = scmp.ne.s32.totalorder %s25, %s28
      %p37 = scmp.eq.s32.totalorder %s20, 1
      %p38 = por %p36, %p37
      %p39 = scmp.ne.s32.totalorder %s28, %s29
      %p40 = scmp.eq.s32.totalorder %s20, 0
      %p41 = por %p39, %p40
      %p42 = scmp.ne.s32.totalorder %s28, %s29
      %p43 = scmp.eq.s32.totalorder %s21, 1
      %p44 = por %p42, %p43
      %p46 = scmp.ne.s32.totalorder %s29, %s45
      %p47 = scmp.eq.s32.totalorder %s21, 0
      %p48 = por %p46, %p47
      %s50 = sadd.s32 %s49, 1
      %p53 = scmp.eq.s32.totalorder %s15, 1
      %p54 = scmp.ne.s32.totalorder %s49, %s51
      %p55 = scmp.eq.s32.totalorder %s15, 0
      %p56 = por %p54, %p55
      %p57 = scmp.ne.s32.totalorder %s49, %s51
      %p58 = scmp.eq.s32.totalorder %s20, 1
      %p59 = por %p57, %p58
      %p60 = scmp.ne.s32.totalorder %s51, %s52
      %p61 = scmp.eq.s32.totalorder %s20, 0
      %p62 = por %p60, %p61
      %p63 = scmp.ne.s32.totalorder %s51, %s52
      %p64 = scmp.eq.s32.totalorder %s21, 1
      %p65 = por %p63, %p64
      %p67 = scmp.ne.s32.totalorder %s52, %s66
      %p68 = scmp.eq.s32.totalorder %s21, 0
      %p69 = por %p67, %p68
      %s71 = sadd.s32 %s70, 1
      %p74 = scmp.eq.s32.totalorder %s15, 1
      %p75 = scmp.ne.s32.totalorder %s70, %s72
      %p76 = scmp.eq.s32.totalorder %s15, 0
      %p77 = por %p75, %p76
      %p78 = scmp.ne.s32.totalorder %s70, %s72
      %p79 = scmp.eq.s32.totalorder %s20, 1
      %p80 = por %p78, %p79
      %p81 = scmp.ne.s32.totalorder %s72, %s73
      %p82 = scmp.eq.s32.totalorder %s20, 0
      %p83 = por %p81, %p82
      %p84 = scmp.ne.s32.totalorder %s72, %s73
      %p85 = scmp.eq.s32.totalorder %s21, 1
      %p86 = por %p84, %p85
      %p88 = scmp.ne.s32.totalorder %s73, %s87
      %p89 = scmp.eq.s32.totalorder %s21, 0
      %p90 = por %p88, %p89
      %s91 = ssub.s32 %s15, %s22
      %p92 = scmp.eq.s32.totalorder %s91, 0
      %s94 = sadd.s32 %s93, 1
      %s95 = scalar_select %p92, %s93, %s94
      %p98 = pneg %p92
      %p99 = scmp.eq.s32.totalorder %s15, 1
      %p100 = por %p98, %p99
      %p101 = scmp.ne.s32.totalorder %s93, %s96
      %p102 = scmp.eq.s32.totalorder %s15, 0
      %p103 = por %p101, %p102
      %p104 = scmp.ne.s32.totalorder %s93, %s96
      %p105 = scmp.eq.s32.totalorder %s20, 1
      %p106 = por %p104, %p105
      %p107 = scmp.ne.s32.totalorder %s96, %s97
      %p108 = scmp.eq.s32.totalorder %s20, 0
      %p109 = por %p107, %p108
      %p110 = scmp.ne.s32.totalorder %s96, %s97
      %p111 = scmp.eq.s32.totalorder %s21, 1
      %p112 = por %p110, %p111
      %p114 = scmp.ne.s32.totalorder %s97, %s113
      %p115 = scmp.eq.s32.totalorder %s21, 0
      %p116 = por %p114, %p115
      %p117 = scmp.le.s32.totalorder 1, %s15
      %p118 = scmp.lt.s32.totalorder %s15, 3
      %p119 = pnand %p117, %p118
      %p120 = pneg %p119
      // Predicated region
      $region9: #{tpu_custom_call.1} parent=5 // pred_check
        _
      $region10: #{tpu_custom_call.1} parent=5 // pred_check_branch
        %122 = sbr.rel (%p119) target = $region12
      $region11: #{tpu_custom_call.1} parent=5 // pred_region
        %s123 = ssub.s32 %s15, 1
        // Predicated region
        $region13: #{tpu_custom_call.1} parent=11 // pred_check
          %p124 = pneg %p62
        $region14: #{tpu_custom_call.1} parent=11 // pred_check_branch
          %126 = sbr.rel (%p124) target = $region16
        $region15: #{tpu_custom_call.1} parent=11 // pred_region
          _
        $region16: #{tpu_custom_call.1} parent=11 // pred_fallthru
          _
        // Predicated region
        $region17: #{tpu_custom_call.1} parent=11 // pred_check
          %p127 = pneg %p83
        $region18: #{tpu_custom_call.1} parent=11 // pred_check_branch
          %129 = sbr.rel (%p127) target = $region20
        $region19: #{tpu_custom_call.1} parent=11 // pred_region
          _
        $region20: #{tpu_custom_call.1} parent=11 // pred_fallthru
          _
      $region12: #{tpu_custom_call.1} parent=5 // pred_fallthru
        _
      %p130 = scmp.lt.s32.totalorder %s15, 2
      // Predicated region
      $region21: #{tpu_custom_call.1} parent=5 // pred_check
        %p131 = pneg %p130
      $region22: #{tpu_custom_call.1} parent=5 // pred_check_branch
        %133 = sbr.rel (%p131) target = $region24
      $region23: #{tpu_custom_call.1} parent=5 // pred_region
        // Predicated region
        $region25: #{tpu_custom_call.1} parent=23 // pred_check
          %p134 = pneg %p35
        $region26: #{tpu_custom_call.1} parent=23 // pred_check_branch
          %136 = sbr.rel (%p134) target = $region28
        $region27: #{tpu_custom_call.1} parent=23 // pred_region
          %s137 = sand.u32 %s25, 1
          %s138 = scalar_lea.sflag [#allocation4], %s137
          %s139 = sand.u32 %s25, 1
          %s140 = smul.addr %s139, 16
          %s141 = scalar_lea.vmem [#allocation3], %s140
          %s143 = ssub.s32 256, 256
          %144 = vsyncadd %s138, %s143
          %s145 = smul.addr %s15, 2
          %s146 = smul.addr %s145, 128
          %s147 = scalar_lea.hbm %s0, %s146
          %s149 = sshll.u32 %s141, 4
          %s150 = int_to_ptr.vmem [resolvable:$true] %s149
          %152 = dma.hbm_to_vmem [thread:$0]  %s147, 256, %s150, %s138
        $region28: #{tpu_custom_call.1} parent=23 // pred_fallthru
          _
      $region24: #{tpu_custom_call.1} parent=5 // pred_fallthru
        _
      %p153 = scmp.le.s32.totalorder 1, %s15
      %p154 = scmp.lt.s32.totalorder %s15, 3
      %p155 = pnand %p153, %p154
      %p156 = pneg %p155
      // Predicated region
      $region29: #{tpu_custom_call.1} parent=5 // pred_check
        _
      $region30: #{tpu_custom_call.1} parent=5 // pred_check_branch
        %158 = sbr.rel (%p155) target = $region32
      $region31: #{tpu_custom_call.1} parent=5 // pred_region
        %s159 = ssub.s32 %s15, 1
        %s160 = sand.u32 %s28, 1
        %s161 = scalar_lea.sflag [#allocation4], %s160
        %s162 = sand.u32 %s28, 1
        %s163 = smul.addr %s162, 16
        %s164 = scalar_lea.vmem [#allocation3], %s163
        // Predicated region
        $region33: #{tpu_custom_call.1} parent=31 // pred_check
          %p165 = pneg %p41
        $region34: #{tpu_custom_call.1} parent=31 // pred_check_branch
          %167 = sbr.rel (%p165) target = $region36
        $region35: #{tpu_custom_call.1} parent=31 // pred_region
          %168 = dma.done %s161, 256
        $region36: #{tpu_custom_call.1} parent=31 // pred_fallthru
          _
        %s169 = sand.u32 %s28, 1
        %s170 = scalar_lea.sflag [#allocation4], %s169
        %s171 = sand.u32 %s28, 1
        %s172 = smul.addr %s171, 16
        %s173 = scalar_lea.vmem [#allocation3], %s172
        %p174 = pneg %p41
        %p175 = pneg %p38
        %p176 = pneg %p62
        %p177 = pneg %p59
        %p178 = pneg %p83
        %p179 = pneg %p80
        %p180 = pneg %p109
        %p181 = pneg %p106
        %s182 = sand.u32 %s96, 1
        %s183 = scalar_lea.sflag [#allocation5], %s182
        %s184 = sand.u32 %s96, 1
        %s185 = smul.addr %s184, 16
        %s186 = scalar_lea.vmem [#allocation6], %s185
        %v187 = vld [vmem:[%s164] sm:$0xff]
        %v188 = vld [vmem:[%s164 + $0x8] sm:$0xff]
        %v189 = vlaneseq
        %v190 = vand.u32 %v189, 127
        %v191 = vadd.s32 %v190, 128
        %v192 = vand.u32 %v190, 15
        %v193 = vand.u32 %v191, 15
        %194 = vrot.lane.b32.xlu0 %v187, 17
        %v195 = vpop.permute.xlu0 %194
        %196 = vrot.lane.b32.xlu0 %v188, 17
        %v197 = vpop.permute.xlu0 %196
        %vm198 = vcmp.lt.s32.totalorder %v190, 17
        %v199 = vsel %vm198, %v195, %v197
        %v200 = vsel %vm198, %v197, %v195
        %vm201 = vcmp.ge.s32.totalorder %v190, 16
        %vm202 = vcmp.ge.s32.totalorder %v191, 16
        %vm203 = vcmp.ge.s32.totalorder %v192, 1
        %vm204 = vcmp.ge.s32.totalorder %v193, 1
        %vm205 = vmand %vm201, %vm203
        %vm206 = vmand %vm202, %vm204
        %v207 = vsel %vm205, %v200, 0.0
        %v208 = vsel %vm206, %v199, 0.0
        %209 = vst [vmem:[#allocation2] sm:$0xff] %v207
        %210 = vst [vmem:[#allocation2 + $0x8] sm:$0xff] %v208
        %211 = vrot.lane.b32.xlu0 %v187, 16
        %v212 = vpop.permute.xlu0 %211
        %213 = vrot.lane.b32.xlu0 %v188, 16
        %v214 = vpop.permute.xlu0 %213
        %vm215 = vcmp.lt.s32.totalorder %v190, 16
        %v216 = vsel %vm215, %v212, %v214
        %v217 = vsel %vm215, %v214, %v212
        %v218 = vsel %vm201, %v217, 0.0
        %v219 = vsel %vm202, %v216, 0.0
        %220 = vst [vmem:[#allocation2 + $0x10] sm:$0xff] %v218
        %221 = vst [vmem:[#allocation2 + $0x18] sm:$0xff] %v219
        %222 = vrot.lane.b32.xlu0 %v187, 15
        %v223 = vpop.permute.xlu0 %222
        %224 = vrot.lane.b32.xlu0 %v188, 15
        %v225 = vpop.permute.xlu0 %224
        %vm226 = vcmp.lt.s32.totalorder %v190, 15
        %v227 = vsel %vm226, %v223, %v225
        %v228 = vsel %vm226, %v225, %v223
        %vm229 = vcmp.lt.s32.totalorder %v192, 15
        %vm230 = vcmp.lt.s32.totalorder %v193, 15
        %vm231 = vmand %vm201, %vm229
        %vm232 = vmand %vm202, %vm230
        %v233 = vsel %vm231, %v228, 0.0
        %v234 = vsel %vm232, %v227, 0.0
        %235 = vst [vmem:[#allocation2 + $0x20] sm:$0xff] %v233
        %236 = vst [vmem:[#allocation2 + $0x28] sm:$0xff] %v234
        %237 = vrot.lane.b32.xlu0 %v187, 1
        %v238 = vpop.permute.xlu0 %237
        %239 = vrot.lane.b32.xlu0 %v188, 1
        %v240 = vpop.permute.xlu0 %239
        %vm241 = vcmp.lt.s32.totalorder %v190, 1
        %v242 = vsel %vm241, %v238, %v240
        %v243 = vsel %vm241, %v240, %v238
        %v244 = vsel %vm203, %v243, 0.0
        %v245 = vsel %vm204, %v242, 0.0
        %246 = vst [vmem:[#allocation2 + $0x30] sm:$0xff] %v244
        %247 = vst [vmem:[#allocation2 + $0x38] sm:$0xff] %v245
        %248 = vst [vmem:[#allocation2 + $0x40] sm:$0xff] %v187
        %249 = vst [vmem:[#allocation2 + $0x48] sm:$0xff] %v188
        %250 = vrot.lane.b32.xlu0 %v187, 127
        %v251 = vpop.permute.xlu0 %250
        %252 = vrot.lane.b32.xlu0 %v188, 127
        %v253 = vpop.permute.xlu0 %252
        %vm254 = vcmp.lt.s32.totalorder %v190, 127
        %v255 = vsel %vm254, %v251, %v253
        %v256 = vsel %vm254, %v253, %v251
        %v257 = vsel %vm229, %v255, 0.0
        %v258 = vsel %vm230, %v256, 0.0
        %259 = vst [vmem:[#allocation2 + $0x50] sm:$0xff] %v257
        %260 = vst [vmem:[#allocation2 + $0x58] sm:$0xff] %v258
        %261 = vrot.lane.b32.xlu0 %v187, 113
        %v262 = vpop.permute.xlu0 %261
        %263 = vrot.lane.b32.xlu0 %v188, 113
        %v264 = vpop.permute.xlu0 %263
        %vm265 = vcmp.lt.s32.totalorder %v190, 113
        %v266 = vsel %vm265, %v262, %v264
        %v267 = vsel %vm265, %v264, %v262
        %vm268 = vcmp.lt.s32.totalorder %v190, 240
        %vm269 = vcmp.lt.s32.totalorder %v191, 240
        %vm270 = vmand %vm268, %vm203
        %vm271 = vmand %vm269, %vm204
        %v272 = vsel %vm270, %v266, 0.0
        %v273 = vsel %vm271, %v267, 0.0
        %274 = vst [vmem:[#allocation2 + $0x60] sm:$0xff] %v272
        %275 = vst [vmem:[#allocation2 + $0x68] sm:$0xff] %v273
        %276 = vrot.lane.b32.xlu0 %v187, 112
        %v277 = vpop.permute.xlu0 %276
        %278 = vrot.lane.b32.xlu0 %v188, 112
        %v279 = vpop.permute.xlu0 %278
        %vm280 = vcmp.lt.s32.totalorder %v190, 112
        %v281 = vsel %vm280, %v277, %v279
        %v282 = vsel %vm280, %v279, %v277
        %v283 = vsel %vm268, %v281, 0.0
        %v284 = vsel %vm269, %v282, 0.0
        %285 = vst [vmem:[#allocation2 + $0x70] sm:$0xff] %v283
        %286 = vst [vmem:[#allocation2 + $0x78] sm:$0xff] %v284
        %287 = vrot.lane.b32.xlu0 %v187, 111
        %v288 = vpop.permute.xlu0 %287
        %289 = vrot.lane.b32.xlu0 %v188, 111
        %v290 = vpop.permute.xlu0 %289
        %vm291 = vcmp.lt.s32.totalorder %v190, 111
        %v292 = vsel %vm291, %v288, %v290
        %v293 = vsel %vm291, %v290, %v288
        %vm294 = vmand %vm268, %vm229
        %vm295 = vmand %vm269, %vm230
        %v296 = vsel %vm294, %v292, 0.0
        %v297 = vsel %vm295, %v293, 0.0
        %298 = vst [vmem:[#allocation2 + $0x80] sm:$0xff] %v296
        %299 = vst [vmem:[#allocation2 + $0x88] sm:$0xff] %v297
        %v300 = vld [vmem:[%s1] sm:$0xff]
        %v301 = vmul.f32 %v300, 0.16666667
        %v302 = vld [vmem:[#allocation2] sm:$0xff]
        %v303 = vld [vmem:[#allocation2 + $0x8] sm:$0xff]
        %v304 = vld [vmem:[#allocation2 + $0x10] sm:$0xff]
        %v305 = vld [vmem:[#allocation2 + $0x18] sm:$0xff]
        %v306 = vld [vmem:[#allocation2 + $0x20] sm:$0xff]
        %v307 = vld [vmem:[#allocation2 + $0x28] sm:$0xff]
        %v308 = vld [vmem:[#allocation2 + $0x30] sm:$0xff]
        %v309 = vld [vmem:[#allocation2 + $0x38] sm:$0xff]
        %v310 = vld [vmem:[#allocation2 + $0x40] sm:$0xff]
        %v311 = vld [vmem:[#allocation2 + $0x48] sm:$0xff]
        %v312 = vld [vmem:[#allocation2 + $0x50] sm:$0xff]
        %v313 = vld [vmem:[#allocation2 + $0x58] sm:$0xff]
        %v314 = vld [vmem:[#allocation2 + $0x60] sm:$0xff]
        %v315 = vld [vmem:[#allocation2 + $0x68] sm:$0xff]
        %v316 = vld [vmem:[#allocation2 + $0x70] sm:$0xff]
        %v317 = vld [vmem:[#allocation2 + $0x78] sm:$0xff]
        %v318 = vld [vmem:[#allocation2 + $0x80] sm:$0xff]
        %v319 = vld [vmem:[#allocation2 + $0x88] sm:$0xff]
        %v320 = vld [vmem:[%s2] sm:$0xff]
        %322 = vset.pattern.permute.xlu0 0
        %323 = vperm.xlu0 %322, %v320
        %v324 = vpop.permute.xlu0 %323
        %vm326 = vcmask 588800
        %v328 = vsel %vm326, %v301, 0
        %330 = vmatprep.subr.mxu0 0.0
        %331 = vmatpush1.msra.mxu0 0.0
        %332 = vmatprep.subr.mxu0 0.0
        %333 = vmatpush1.msra.mxu0 0.0
        %334 = vmatprep.subr.mxu0 0.0
        %335 = vmatpush1.msra.mxu0 0.0
        %336 = vmatprep.subr.mxu0 0.0
        %337 = vmatpush1.msra.mxu0 0.0
        %338 = vmatprep.subr.mxu0 0.0
        %339 = vmatpush1.msra.mxu0 0.0
        %340 = vmatprep.subr.mxu0 0.0
        %341 = vmatpush1.msra.mxu0 0.0
        %342 = vmatprep.subr.mxu0 0.0
        %343 = vmatpush1.msra.mxu0 0.0
        %344 = vmatprep.subr.mxu0 %v319
        %345 = vmatpush1.msra.mxu0 %v318
        %346 = vmatprep.subr.mxu0 %v317
        %347 = vmatpush1.msra.mxu0 %v316
        %348 = vmatprep.subr.mxu0 %v315
        %349 = vmatpush1.msra.mxu0 %v314
        %350 = vmatprep.subr.mxu0 %v313
        %351 = vmatpush1.msra.mxu0 %v312
        %352 = vmatprep.subr.mxu0 %v311
        %353 = vmatpush1.msra.mxu0 %v310
        %354 = vmatprep.subr.mxu0 %v309
        %355 = vmatpush1.msra.mxu0 %v308
        %356 = vmatprep.subr.mxu0 %v307
        %357 = vmatpush1.msra.mxu0 %v306
        %358 = vmatprep.subr.mxu0 %v305
        %359 = vmatpush1.msra.mxu0 %v304
        %360 = vmatprep.subr.mxu0 %v303
        %361 = vmatpush1.msra.mxu0 %v302
        %362 = vmatprep.subr.mxu0 0.0
        %363 = vmatpush2.msra.mxu0 0.0
        %364 = vmatprep.subr.mxu0 0.0
        %365 = vmatpush2.msra.mxu0 0.0
        %366 = vmatprep.subr.mxu0 0.0
        %367 = vmatpush2.msra.mxu0 0.0
        %368 = vmatprep.subr.mxu0 0.0
        %369 = vmatpush2.msra.mxu0 0.0
        %370 = vmatprep.subr.mxu0 0.0
        %371 = vmatpush2.msra.mxu0 0.0
        %372 = vmatprep.subr.mxu0 0.0
        %373 = vmatpush2.msra.mxu0 0.0
        %374 = vmatprep.subr.mxu0 0.0
        %375 = vmatpush2.msra.mxu0 0.0
        %376 = vmatprep.subr.mxu0 0.0
        %377 = vmatpush2.msra.mxu0 0.0
        %378 = vmatprep.subr.mxu0 0.0
        %379 = vmatpush2.msra.mxu0 0.0
        %380 = vmatprep.subr.mxu0 0.0
        %381 = vmatpush2.msra.mxu0 0.0
        %382 = vmatprep.subr.mxu0 0.0
        %383 = vmatpush2.msra.mxu0 0.0
        %384 = vmatprep.subr.mxu0 0.0
        %385 = vmatpush2.msra.mxu0 0.0
        %386 = vmatprep.subr.mxu0 0.0
        %387 = vmatpush2.msra.mxu0 0.0
        %388 = vmatprep.subr.mxu0 0.0
        %389 = vmatpush2.msra.mxu0 0.0
        %390 = vmatprep.subr.mxu0 0.0
        %391 = vmatpush2.msra.mxu0 0.0
        %392 = vmatprep.subr.mxu0 0.0
        %393 = vmatpush2.msra.mxu0 0.0
        %394 = vmatprep.mubr.f32.mxu0 0.0
        %395 = vmatmul.mubr.f32.gmra.mxu0 %v328
        %v396 = vpop.f32.mrf.mxu0
        %v397 = vadd.f32 %v324, %v396
        %v398 = vpop.f32.mrf.mxu0
        %v399 = vadd.f32 %v324, %v398
        %400 = vdwg.mxu0
        %401 = vst [vmem:[%s186] sm:$0xff] %v397
        %402 = vst [vmem:[%s186 + $0x8] sm:$0xff] %v399
        %s403 = sand.u32 %s96, 1
        %s404 = scalar_lea.sflag [#allocation5], %s403
        %s405 = sand.u32 %s96, 1
        %s406 = smul.addr %s405, 16
        %s407 = scalar_lea.vmem [#allocation6], %s406
        // Predicated region
        $region37: #{tpu_custom_call.1} parent=31 // pred_check
          %p408 = pneg %p106
        $region38: #{tpu_custom_call.1} parent=31 // pred_check_branch
          %410 = sbr.rel (%p408) target = $region40
        $region39: #{tpu_custom_call.1} parent=31 // pred_region
          %s412 = ssub.s32 256, 256
          %413 = vsyncadd %s404, %s412
          %s414 = smul.addr %s20, 2
          %s415 = smul.addr %s414, 128
          %s416 = scalar_lea.hbm %s3, %s415
          %s418 = sshll.u32 %s407, 4
          %s419 = int_to_ptr.vmem [resolvable:$true] %s418
          %421 = dma.vmem_to_hbm [thread:$0]  %s419, 256, %s416, %s404
        $region40: #{tpu_custom_call.1} parent=31 // pred_fallthru
          _
      $region32: #{tpu_custom_call.1} parent=5 // pred_fallthru
        _
      %p422 = scmp.le.s32.totalorder 2, %s15
      // Predicated region
      $region41: #{tpu_custom_call.1} parent=5 // pred_check
        %p423 = pneg %p422
      $region42: #{tpu_custom_call.1} parent=5 // pred_check_branch
        %425 = sbr.rel (%p423) target = $region44
      $region43: #{tpu_custom_call.1} parent=5 // pred_region
        %s426 = ssub.s32 %s15, 2
        // Predicated region
        $region45: #{tpu_custom_call.1} parent=43 // pred_check
          %p427 = pneg %p112
        $region46: #{tpu_custom_call.1} parent=43 // pred_check_branch
          %429 = sbr.rel (%p427) target = $region48
        $region47: #{tpu_custom_call.1} parent=43 // pred_region
          %s430 = sand.u32 %s97, 1
          %s431 = scalar_lea.sflag [#allocation5], %s430
          %s432 = sand.u32 %s97, 1
          %s433 = smul.addr %s432, 16
          %s434 = scalar_lea.vmem [#allocation6], %s433
          %435 = dma.done %s431, 256
        $region48: #{tpu_custom_call.1} parent=43 // pred_fallthru
          _
      $region44: #{tpu_custom_call.1} parent=5 // pred_fallthru
        _
    $region6: #{tpu_custom_call.1} parent=1 // loop_footer
      %s19 = sadd.s32 1, %s15
    $region7: #{tpu_custom_call.1} parent=1 // loop_footer_branch
      %14 = sbr.rel target = $region3
    $region8: #{tpu_custom_call.1} parent=1 // loop_exit
      _
    %436 = vsyncpa [#allocation4], 1
    %s437 = scalar_lea.sflag [#allocation4], 1
    %438 = vsyncpa %s437, 1
    %439 = vsyncpa [#allocation5], 1
    %s440 = scalar_lea.sflag [#allocation5], 1
    %441 = vsyncpa %s440, 1

</llo_original>
